<compile_context>
chip_gen: v6e
topology: v6e:2x2x1
jax: 0.10.0
libtpu: 0.0.40
codegen_flags: <defaults>
</compile_context>

<pallas_src>
import jax
import jax.numpy as jnp
import numpy as np
from jax.experimental import pallas as pl
from jax.experimental.pallas import tpu as pltpu

# --- Rule hyper-parameters (match the PyTorch module defaults) ---------------
CHANNELS = 8
RADIUS = 2
RK = 2 * RADIUS + 1
ALPHA = 4.0
MU = 0.15
SIGMA = 0.017


def generate_kernel():
    """NumPy port of Rule.generate_kernel(): (1, C, Rk, Rk), deterministic."""
    lin = np.linspace(-1.0, 1.0, RK).astype(np.float32)
    xm, ym = np.meshgrid(lin, lin, indexing="ij")        # torch.meshgrid default 'ij'
    rm = np.sqrt(xm ** 2 + ym ** 2)
    rm1 = np.where(rm <= 1.0 - 1e-6, rm, 0.0).astype(np.float32)
    with np.errstate(divide="ignore"):
        u = ALPHA * (1.0 - 1.0 / (4.0 * rm1 * (1.0 - rm1)))   # -inf where rm1 == 0
    k = np.exp(u)                                              # exp(-inf) -> 0
    k = k / k.sum()
    k = np.broadcast_to(k[None, None, :, :], (1, CHANNELS, RK, RK))
    return np.ascontiguousarray(k, dtype=np.float32)


def _tensorcores_per_chip():
    """Best-effort TC count (v7x=2, v5e/v6e=1).  Defaults to 1 (always correct)."""
    try:
        info = pltpu.get_tpu_info()
        for attr in ("num_cores", "core_count", "tensorcores_per_chip",
                     "num_tensorcores"):
            v = getattr(info, attr, None)
            if isinstance(v, int) and v > 0:
                return v
    except Exception:
        pass
    try:
        if "v7" in jax.devices()[0].device_kind.lower():
            return 2
    except Exception:
        pass
    return 1


# --- Pallas kernel factory (conv taps baked as constants) ---------------------
def make_rule_kernel(taps, *, C, H, W, NB, mu, sigma):
    Rk = taps.shape[0]
    R = Rk // 2
    HW = H * W
    inv_two_sigma2 = 1.0 / (2.0 * float(sigma) ** 2)
    mu = float(mu)
    w_pow2 = (W & (W - 1)) == 0
    # Column offsets carrying at least one nonzero tap (the bump kernel has only
    # 8 nonzero taps, all with |offset| <= 1 -> zero taps cost nothing).
    live_ox = [ox for ox in range(-R, R + 1)
               if any(float(taps[oy + R, ox + R]) != 0.0 for oy in range(-R, R + 1))]

    def kernel(x_ref, o_ref):
        # x_ref / o_ref: (NB, C, H*W) float32 in VMEM, lane-dense.
        x = x_ref[...]                                       # (NB, C, HW)

        # Channel-shared K => reduce over channels before the stencil.  One
        # batched reduce over the whole block (not NB separate sums).
        s = jnp.sum(x, axis=1)                               # (NB, HW)

        # Column index / boundary masks: hoisted, computed once per invocation.
        lane = jax.lax.broadcasted_iota(jnp.int32, (NB, HW), 1)
        col_idx = (lane & (W - 1)) if w_pow2 else (lane % W)

        # Column shifts on the torus: plane[h, w] -> plane[h, (w+ox) % W].
        # axis=1 rolls act per-row (per batch), so batches stay independent.
        cols = {}
        for ox in live_ox:
            if ox == 0:
                cols[ox] = s
                continue
            main = pltpu.roll(s, (-ox) % HW, axis=1)
            if ox > 0:
                wrap = pltpu.roll(s, (W - ox) % HW, axis=1)
                keep_main = col_idx < (W - ox)               # w + ox stays in its row
            else:
                wrap = pltpu.roll(s, (-ox - W) % HW, axis=1)
                keep_main = col_idx >= (-ox)                 # w + ox stays in its row
            cols[ox] = jnp.where(keep_main, main, wrap)

        # Row shifts + tap accumulation:
        # result[h, w] = sum_{oy,ox} taps[oy,ox] * s[(h+oy)%H, (w+ox)%W].
        acc = None
        for oy in range(-R, R + 1):
            row = None
            for ox in live_ox:
                kv = float(taps[oy + R, ox + R])
                if kv == 0.0:
                    continue
                term = kv * cols[ox]
                row = term if row is None else row + term
            if row is None:
                continue
            shifted = row if oy == 0 else pltpu.roll(row, (-oy * W) % HW, axis=1)
            acc = shifted if acc is None else acc + shifted

        # Growth function (constants folded: 0.1 * (2*exp(.) - 1) = 0.2*exp(.) - 0.1)
        d = acc - mu
        dt = 0.2 * jnp.exp(-(d * d) * inv_two_sigma2) - 0.1  # (NB, HW)

        # Broadcast dt over channels and update the state.
        o_ref[...] = jnp.clip(x + dt[:, None, :], 0.0, 1.0)

    return kernel


def rule_forward(x, K):
    """x: (N, C, H, W) float32, K: (1, C, Rk, Rk) float32 -> (N, C, H, W)."""
    N, C, H, W = x.shape
    K_np = np.asarray(K, dtype=np.float32)
    assert K_np.shape[1] == C
    # The channel-sum-before-stencil rewrite is only valid because every channel
    # slice of K is identical (Rule.generate_kernel repeats one 5x5 bump).  K is
    # consumed as a trace-time NumPy constant; a traced/trainable K is not
    # supported by this path.
    assert np.array_equal(K_np[0], np.broadcast_to(K_np[0, :1], K_np[0].shape)), (
        "rule_forward requires channel-invariant conv taps")
    taps = K_np[0, 0]                                        # (Rk, Rk)
    R = taps.shape[0] // 2
    assert R < H and R < W

    HW = H * W
    # Single grid step on 1-TC chips (v5e / v6e): each extra grid step costs
    # ~0.35 us of fixed overhead, comparable to the whole compute here.  Two
    # "parallel" steps only when the chip actually has 2 TCs (v7x) and N splits.
    n_tc = _tensorcores_per_chip()
    num_steps = 2 if (n_tc >= 2 and N >= 2 and N % 2 == 0) else 1
    NB = N // num_steps

    # Lane-dense layout for the I/O + elementwise path (free, contiguous reshape).
    x_flat = x.reshape(N, C, HW)

    kernel = make_rule_kernel(taps, C=C, H=H, W=W, NB=NB, mu=MU, sigma=SIGMA)

    # TODO(synk): for iterative Lenia stepping, move the time loop inside the
    #             kernel (state resident in VMEM scratch, lax.fori_loop over T)
    #             and use input_output_aliases={0: 0} to chain steps in place —
    #             a single step is dominated by launch + HBM round-trip.
    # NOTE: for large boards (H, W >> 16) the block should be a row band with a
    #       2R halo instead of whole images (VMEM limits, especially v7x's 64 MiB),
    #       which also lets both v7x TCs share a single image when N is odd.
    out_flat = pl.pallas_call(
        kernel,
        out_shape=jax.ShapeDtypeStruct((N, C, HW), x.dtype),
        grid_spec=pltpu.PrefetchScalarGridSpec(
            num_scalar_prefetch=0,
            grid=(num_steps,),
            in_specs=[pl.BlockSpec((NB, C, HW), lambda g: (g, 0, 0))],
            out_specs=pl.BlockSpec((NB, C, HW), lambda g: (g, 0, 0)),
        ),
        compiler_params=pltpu.CompilerParams(
            dimension_semantics=("parallel",)),
    )(x_flat)
    return out_flat.reshape(N, C, H, W)


# --- Pure-JAX reference for verification --------------------------------------
def rule_reference(x, K):
    K = jnp.asarray(K)
    R = K.shape[-1] // 2
    A = jnp.pad(x, ((0, 0), (0, 0), (R, R), (R, R)), mode="wrap")
    conv = jax.lax.conv_general_dilated(
        A, K, window_strides=(1, 1), padding="VALID",
        dimension_numbers=("NCHW", "OIHW", "NCHW"),
        precision=jax.lax.Precision.HIGHEST)
    g = 2.0 * jnp.exp(-jnp.abs(conv - MU) ** 2 / (2.0 * SIGMA * SIGMA)) - 1.0
    return jnp.clip(x + 0.1 * g, 0.0, 1.0)


if __name__ == "__main__":
    key = jax.random.PRNGKey(0)
    N, C, H, W = 2, CHANNELS, 16, 16
    # Scale the state so the neighbourhood potential lands near mu; this exercises
    # the growth function instead of its saturated exp-underflow tail.
    x = 0.0375 * jax.random.uniform(key, (N, C, H, W), dtype=jnp.float32)

    K = generate_kernel()

    out = jax.block_until_ready(rule_forward(x, K))
    ref = jax.block_until_ready(rule_reference(x, K))
    np.testing.assert_allclose(np.asarray(out), np.asarray(ref), atol=1e-4, rtol=1e-4)

    print("KERNEL_OK")
</pallas_src>

<mosaic_0001>
module attributes {stable_mosaic.version = 11 : i64} {
  func.func @kernel(%arg0: i32, %arg1: memref<2x8x256xf32, #tpu.memory_space<vmem>>, %arg2: memref<2x8x256xf32, #tpu.memory_space<vmem>>) attributes {dimension_semantics = [#tpu.dimension_semantics<parallel>], iteration_bounds = array<i64: 1>, scalar_prefetch = 0 : i64, scratch_operands = 0 : i64, tpu.core_type = #tpu.core_type<tc>, window_params = [{transform_indices = @transform_0, window_bounds = array<i64: 2, 8, 256>}, {transform_indices = @transform_1, window_bounds = array<i64: 2, 8, 256>}]} {
    %c0 = arith.constant 0 : index
    %c0_0 = arith.constant 0 : index
    %c0_1 = arith.constant 0 : index
    %0 = vector.load %arg1[%c0, %c0_0, %c0_1] : memref<2x8x256xf32, #tpu.memory_space<vmem>>, vector<2x8x256xf32>
    %cst = arith.constant dense<0.000000e+00> : vector<2x256xf32>
    %1 = vector.multi_reduction <add>, %0, %cst [1] : vector<2x8x256xf32> to vector<2x256xf32>
    %2 = tpu.iota {dimensions = array<i32: 1>} : vector<2x256xi32>
    %c15_i32 = arith.constant 15 : i32
    %3 = vector.broadcast %c15_i32 : i32 to vector<2x256xi32>
    %4 = arith.andi %2, %3 : vector<2x256xi32>
    %c1_i32 = arith.constant 1 : i32
    %5 = tpu.dynamic_rotate %1 by %c1_i32 dim 1 : vector<2x256xf32>, i32 -> vector<2x256xf32>
    %c241_i32 = arith.constant 241 : i32
    %6 = tpu.dynamic_rotate %1 by %c241_i32 dim 1 : vector<2x256xf32>, i32 -> vector<2x256xf32>
    %c1_i32_2 = arith.constant 1 : i32
    %7 = vector.broadcast %c1_i32_2 : i32 to vector<2x256xi32>
    %8 = arith.cmpi sge, %4, %7 : vector<2x256xi32>
    %9 = arith.select %8, %5, %6 : vector<2x256xi1>, vector<2x256xf32>
    %c255_i32 = arith.constant 255 : i32
    %10 = tpu.dynamic_rotate %1 by %c255_i32 dim 1 : vector<2x256xf32>, i32 -> vector<2x256xf32>
    %c15_i32_3 = arith.constant 15 : i32
    %11 = tpu.dynamic_rotate %1 by %c15_i32_3 dim 1 : vector<2x256xf32>, i32 -> vector<2x256xf32>
    %c15_i32_4 = arith.constant 15 : i32
    %12 = vector.broadcast %c15_i32_4 : i32 to vector<2x256xi32>
    %13 = arith.cmpi slt, %4, %12 : vector<2x256xi32>
    %14 = arith.select %13, %10, %11 : vector<2x256xi1>, vector<2x256xf32>
    %cst_5 = arith.constant 0.0759944543 : f32
    %15 = vector.broadcast %cst_5 : f32 to vector<2x256xf32>
    %16 = arith.mulf %15, %9 : vector<2x256xf32>
    %cst_6 = arith.constant 0.174005553 : f32
    %17 = vector.broadcast %cst_6 : f32 to vector<2x256xf32>
    %18 = arith.mulf %17, %1 : vector<2x256xf32>
    %19 = arith.addf %16, %18 : vector<2x256xf32>
    %cst_7 = arith.constant 0.0759944543 : f32
    %20 = vector.broadcast %cst_7 : f32 to vector<2x256xf32>
    %21 = arith.mulf %20, %14 : vector<2x256xf32>
    %22 = arith.addf %19, %21 : vector<2x256xf32>
    %c16_i32 = arith.constant 16 : i32
    %23 = tpu.dynamic_rotate %22 by %c16_i32 dim 1 : vector<2x256xf32>, i32 -> vector<2x256xf32>
    %cst_8 = arith.constant 0.174005553 : f32
    %24 = vector.broadcast %cst_8 : f32 to vector<2x256xf32>
    %25 = arith.mulf %24, %9 : vector<2x256xf32>
    %cst_9 = arith.constant 0.174005553 : f32
    %26 = vector.broadcast %cst_9 : f32 to vector<2x256xf32>
    %27 = arith.mulf %26, %14 : vector<2x256xf32>
    %28 = arith.addf %25, %27 : vector<2x256xf32>
    %29 = arith.addf %23, %28 : vector<2x256xf32>
    %cst_10 = arith.constant 0.0759944543 : f32
    %30 = vector.broadcast %cst_10 : f32 to vector<2x256xf32>
    %31 = arith.mulf %30, %9 : vector<2x256xf32>
    %cst_11 = arith.constant 0.174005553 : f32
    %32 = vector.broadcast %cst_11 : f32 to vector<2x256xf32>
    %33 = arith.mulf %32, %1 : vector<2x256xf32>
    %34 = arith.addf %31, %33 : vector<2x256xf32>
    %cst_12 = arith.constant 0.0759944543 : f32
    %35 = vector.broadcast %cst_12 : f32 to vector<2x256xf32>
    %36 = arith.mulf %35, %14 : vector<2x256xf32>
    %37 = arith.addf %34, %36 : vector<2x256xf32>
    %c240_i32 = arith.constant 240 : i32
    %38 = tpu.dynamic_rotate %37 by %c240_i32 dim 1 : vector<2x256xf32>, i32 -> vector<2x256xf32>
    %39 = arith.addf %29, %38 : vector<2x256xf32>
    %cst_13 = arith.constant 1.500000e-01 : f32
    %40 = vector.broadcast %cst_13 : f32 to vector<2x256xf32>
    %41 = arith.subf %39, %40 : vector<2x256xf32>
    %42 = arith.mulf %41, %41 : vector<2x256xf32>
    %cst_14 = arith.constant 0.000000e+00 : f32
    %43 = vector.broadcast %cst_14 : f32 to vector<2x256xf32>
    %44 = arith.subf %43, %42 : vector<2x256xf32>
    %cst_15 = arith.constant 1730.10376 : f32
    %45 = vector.broadcast %cst_15 : f32 to vector<2x256xf32>
    %46 = arith.mulf %44, %45 : vector<2x256xf32>
    %47 = math.exp %46 : vector<2x256xf32>
    %cst_16 = arith.constant 2.000000e-01 : f32
    %48 = vector.broadcast %cst_16 : f32 to vector<2x256xf32>
    %49 = arith.mulf %48, %47 : vector<2x256xf32>
    %cst_17 = arith.constant 1.000000e-01 : f32
    %50 = vector.broadcast %cst_17 : f32 to vector<2x256xf32>
    %51 = arith.subf %49, %50 : vector<2x256xf32>
    %52 = vector.shape_cast %51 : vector<2x256xf32> to vector<2x1x256xf32>
    %53 = vector.broadcast %52 : vector<2x1x256xf32> to vector<2x8x256xf32>
    %54 = arith.addf %0, %53 : vector<2x8x256xf32>
    %cst_18 = arith.constant 0.000000e+00 : f32
    %cst_19 = arith.constant 1.000000e+00 : f32
    %55 = vector.broadcast %cst_18 : f32 to vector<2x8x256xf32>
    %56 = arith.maximumf %55, %54 : vector<2x8x256xf32>
    %57 = vector.broadcast %cst_19 : f32 to vector<2x8x256xf32>
    %58 = arith.minimumf %57, %56 : vector<2x8x256xf32>
    %c0_20 = arith.constant 0 : index
    %c0_21 = arith.constant 0 : index
    %c0_22 = arith.constant 0 : index
    %59 = vector.load %arg2[%c0_20, %c0_21, %c0_22] : memref<2x8x256xf32, #tpu.memory_space<vmem>>, vector<2x8x256xf32>
    tpu.vector_store %arg2[%c0_20, %c0_21, %c0_22], %58 {strides = array<i32>} : memref<2x8x256xf32, #tpu.memory_space<vmem>>, vector<2x8x256xf32>,
    return
  }
  func.func @transform_0(%arg0: i32) -> (i32, i32, i32) {
    %c0_i32 = arith.constant 0 : i32
    %c0_i32_0 = arith.constant 0 : i32
    %c0_i32_1 = arith.constant 0 : i32
    return %arg0, %c0_i32, %c0_i32_0 : i32, i32, i32
  }
  func.func @transform_1(%arg0: i32) -> (i32, i32, i32) {
    %c0_i32 = arith.constant 0 : i32
    %c0_i32_0 = arith.constant 0 : i32
    %c0_i32_1 = arith.constant 0 : i32
    return %arg0, %c0_i32, %c0_i32_0 : i32, i32, i32
  }
}

</mosaic_0001>

<llo_original>
// kernel: tpu_custom_call.1
$region0: #{tpu_custom_call.1}
  #allocation0 [shape = 'u32[]', space=smem, size = 0x4, offset = 0x4, fixed_abs, tag = 'smem constant byte address 0x4 - core index']
  #allocation1 [shape = 'u32[144,128]{1,0:T(1,128)}', space=vmem, size = 0x12000, scoped, tag = 'internal scratch']
  %s0 = inlined_call_operand.hbm [shape: f32[2,8,256], index: 0, kind: input, shape index: {}]
  %s1 = inlined_call_operand.hbm [shape: f32[2,8,256], index: 1, kind: output, shape index: {}]
  %s2 = sld [smem:[#allocation0]]
  $region18: #{tpu_custom_call.1} parent=0
    _
  %s4 = ssub.s32 1, %s2
  %s5 = scalar_select 0, %s4, %s2
  $region1: #{tpu_custom_call.1} parent=0
    #allocation2 [shape = 'u8[16384]{0}', space=vmem, size = 0x4000, scoped, tag = 'input window, operand 0, single buffered']
    #allocation3 [shape = 's32[1]{0}', space=sflag, size = 0x4, scoped, tag = 'scoped memory for tpu_custom_call.1']
    #allocation4 [shape = 's32[1]{0}', space=sflag, size = 0x4, scoped, tag = 'scoped memory for tpu_custom_call.1']
    #allocation5 [shape = 'u8[16384]{0}', space=vmem, size = 0x4000, scoped, tag = 'output window, operand 0, single buffered']
    %6 = vsyncpa [#allocation3], 0
    %7 = vsyncpa [#allocation4], 0
    // Predicated region
    $region2: #{tpu_custom_call.1} parent=1 // pred_check
      _
    $region3: #{tpu_custom_call.1} parent=1 // pred_check_branch
      %9 = sbr.rel (0) target = $region5
    $region4: #{tpu_custom_call.1} parent=1 // pred_region
      %s11 = ssub.s32 512, 512
      %12 = vsyncadd [#allocation3], %s11
      %s13 = sshll.u32 [#allocation2], 4
      %s14 = int_to_ptr.vmem [resolvable:$true] %s13
      %19 = dma.hbm_to_vmem [thread:$0]  %s0, 512, %s14, [#allocation3], 256, 256, 16
    $region5: #{tpu_custom_call.1} parent=1 // pred_fallthru
      _
    // Predicated region
    $region6: #{tpu_custom_call.1} parent=1 // pred_check
      _
    $region7: #{tpu_custom_call.1} parent=1 // pred_check_branch
      %21 = sbr.rel (0) target = $region9
    $region8: #{tpu_custom_call.1} parent=1 // pred_region
      %22 = dma.done [#allocation3], 512
    $region9: #{tpu_custom_call.1} parent=1 // pred_fallthru
      _
    %v23 = vld [vmem:[#allocation2] sm:$0xff]
    %v24 = vld [vmem:[#allocation2 + $0x8] sm:$0xff]
    %v25 = vld [vmem:[#allocation2 + $0x10] sm:$0xff]
    %v26 = vld [vmem:[#allocation2 + $0x18] sm:$0xff]
    %v27 = vrot.slane %v23, 4
    %v28 = vadd.f32 %v23, %v27
    %v29 = vrot.slane %v28, 2
    %v30 = vadd.f32 %v28, %v29
    %v31 = vrot.slane %v30, 1
    %v32 = vadd.f32 %v30, %v31
    %v33 = vrot.slane %v24, 4
    %v34 = vadd.f32 %v24, %v33
    %v35 = vrot.slane %v34, 2
    %v36 = vadd.f32 %v34, %v35
    %v37 = vrot.slane %v36, 1
    %v38 = vadd.f32 %v36, %v37
    %v39 = vrot.slane %v25, 4
    %v40 = vadd.f32 %v25, %v39
    %v41 = vrot.slane %v40, 2
    %v42 = vadd.f32 %v40, %v41
    %v43 = vrot.slane %v42, 1
    %v44 = vadd.f32 %v42, %v43
    %v45 = vrot.slane %v26, 4
    %v46 = vadd.f32 %v26, %v45
    %v47 = vrot.slane %v46, 2
    %v48 = vadd.f32 %v46, %v47
    %v49 = vrot.slane %v48, 1
    %v50 = vadd.f32 %v48, %v49
    %v51 = vlaneseq
    %v52 = vand.u32 %v51, 127
    %v53 = vadd.s32 %v52, 128
    %v54 = vand.u32 %v52, 15
    %v55 = vand.u32 %v53, 15
    %vm60 = vcmask 1041409
    %v61 = vsel %vm60, %v44, %v32
    %v62 = vsel %vm60, %v50, %v38
    %65 = vrot.lane.b32.xlu0 %v61, 1
    %v66 = vpop.permute.xlu0 %65
    %67 = vrot.lane.b32.xlu0 %v62, 1
    %v68 = vpop.permute.xlu0 %67
    %vm69 = vcmp.lt.s32.totalorder %v52, 1
    %v70 = vsel %vm69, %v66, %v68
    %v71 = vsel %vm69, %v68, %v66
    %72 = vrot.lane.b32.xlu0 %v61, 113
    %v73 = vpop.permute.xlu0 %72
    %74 = vrot.lane.b32.xlu0 %v62, 113
    %v75 = vpop.permute.xlu0 %74
    %vm76 = vcmp.lt.s32.totalorder %v52, 113
    %v77 = vsel %vm76, %v73, %v75
    %v78 = vsel %vm76, %v75, %v73
    %vm79 = vcmp.ge.s32.totalorder %v54, 1
    %vm80 = vcmp.ge.s32.totalorder %v55, 1
    %v81 = vsel %vm79, %v71, %v77
    %v82 = vsel %vm80, %v70, %v78
    %83 = vrot.lane.b32.xlu0 %v61, 127
    %v84 = vpop.permute.xlu0 %83
    %85 = vrot.lane.b32.xlu0 %v62, 127
    %v86 = vpop.permute.xlu0 %85
    %vm87 = vcmp.lt.s32.totalorder %v52, 127
    %v88 = vsel %vm87, %v84, %v86
    %v89 = vsel %vm87, %v86, %v84
    %90 = vrot.lane.b32.xlu0 %v61, 15
    %v91 = vpop.permute.xlu0 %90
    %92 = vrot.lane.b32.xlu0 %v62, 15
    %v93 = vpop.permute.xlu0 %92
    %vm94 = vcmp.lt.s32.totalorder %v52, 15
    %v95 = vsel %vm94, %v91, %v93
    %v96 = vsel %vm94, %v93, %v91
    %vm97 = vcmp.lt.s32.totalorder %v54, 15
    %vm98 = vcmp.lt.s32.totalorder %v55, 15
    %v99 = vsel %vm97, %v88, %v96
    %v100 = vsel %vm98, %v89, %v95
    %v101 = vmul.f32 %v81, 0.075994454
    %v102 = vmul.f32 %v82, 0.075994454
    %v103 = vmul.f32 %v32, 0.17400555
    %v104 = vmul.f32 %v38, 0.17400555
    %v105 = vmul.f32 %v44, 0.17400555
    %v106 = vmul.f32 %v50, 0.17400555
    %v111 = vsel %vm60, %v105, %v103
    %v112 = vsel %vm60, %v106, %v104
    %v115 = vadd.f32 %v101, %v111
    %v116 = vadd.f32 %v102, %v112
    %v117 = vmul.f32 %v99, 0.075994454
    %v118 = vmul.f32 %v100, 0.075994454
    %v119 = vadd.f32 %v115, %v117
    %v120 = vadd.f32 %v116, %v118
    %121 = vrot.lane.b32.xlu0 %v119, 16
    %v122 = vpop.permute.xlu0 %121
    %123 = vrot.lane.b32.xlu0 %v120, 16
    %v124 = vpop.permute.xlu0 %123
    %vm125 = vcmp.lt.s32.totalorder %v52, 16
    %v126 = vsel %vm125, %v122, %v124
    %v127 = vsel %vm125, %v124, %v122
    %v128 = vmul.f32 %v81, 0.17400555
    %v129 = vmul.f32 %v82, 0.17400555
    %v130 = vmul.f32 %v99, 0.17400555
    %v131 = vmul.f32 %v100, 0.17400555
    %v132 = vadd.f32 %v128, %v130
    %v133 = vadd.f32 %v129, %v131
    %v134 = vadd.f32 %v127, %v132
    %v135 = vadd.f32 %v126, %v133
    %136 = vrot.lane.b32.xlu0 %v119, 112
    %v137 = vpop.permute.xlu0 %136
    %138 = vrot.lane.b32.xlu0 %v120, 112
    %v139 = vpop.permute.xlu0 %138
    %vm140 = vcmp.lt.s32.totalorder %v52, 112
    %v141 = vsel %vm140, %v137, %v139
    %v142 = vsel %vm140, %v139, %v137
    %v143 = vadd.f32 %v134, %v141
    %v144 = vadd.f32 %v135, %v142
    %v145 = vsub.f32 %v143, 0.15
    %v146 = vsub.f32 %v144, 0.15
    %v147 = vmul.f32 %v145, %v145
    %v148 = vmul.f32 %v146, %v146
    %v149 = vsub.f32 0.0, %v147
    %v150 = vsub.f32 0.0, %v148
    %v151 = vmul.f32 %v149, 1730.1038
    %v152 = vmul.f32 %v150, 1730.1038
    %v153 = vmul.f32 %v151, 1.442695
    %v154 = vpow.pop %v153
    %v155 = vmul.f32 %v152, 1.442695
    %v156 = vpow.pop %v155
    %v157 = vmul.f32 %v154, 0.2
    %v158 = vmul.f32 %v156, 0.2
    %v159 = vsub.f32 %v157, 0.1
    %v160 = vsub.f32 %v158, 0.1
    %v163 = vcombine.low %v159, %v160
    %v165 = vunpack.c.l.s4 1966171168
    %v166 = vunpack.c.0.s8 %v165
    %v167 = vlaneseq
    %v168 = vshrl.u32 %v167, 7
    %v169 = vsub.s32 %v166, %v168
    %v170 = vrot.slane %v163, %v169
    %v171 = vcombine.high %v170, %v170
    %v173 = vunpack.c.l.s4 1966171168
    %v174 = vunpack.c.0.s8 %v173
    %v175 = vlaneseq
    %v176 = vshrl.u32 %v175, 7
    %v177 = vsub.s32 %v174, %v176
    %v178 = vrot.slane %v170, %v177
    %v180 = vunpack.c.l.s4 1966171168
    %v181 = vunpack.c.0.s8 %v180
    %v182 = vlaneseq
    %v183 = vshrl.u32 %v182, 7
    %v184 = vsub.s32 %v181, %v183
    %v185 = vrot.slane %v171, %v184
    %v186 = vlaneseq
    %v187 = vshrl.u32 %v186, 7
    %v188 = vsub.s32 0, %v187
    %v189 = vrot.slane %v178, %v188
    %v190 = vlaneseq
    %v191 = vshrl.u32 %v190, 7
    %v192 = vsub.s32 1, %v191
    %v193 = vrot.slane %v178, %v192
    %v194 = vlaneseq
    %v195 = vshrl.u32 %v194, 7
    %v196 = vsub.s32 0, %v195
    %v197 = vrot.slane %v185, %v196
    %v198 = vlaneseq
    %v199 = vshrl.u32 %v198, 7
    %v200 = vsub.s32 1, %v199
    %v201 = vrot.slane %v185, %v200
    %v206 = vadd.f32 %v23, %v189
    %v207 = vadd.f32 %v24, %v193
    %v208 = vadd.f32 %v25, %v197
    %v209 = vadd.f32 %v26, %v201
    %v210 = vmax.f32 %v206, 0.0
    %v211 = vmax.f32 %v207, 0.0
    %v212 = vmax.f32 %v208, 0.0
    %v213 = vmax.f32 %v209, 0.0
    %v214 = vmin.f32 %v210, 1.0
    %v215 = vmin.f32 %v211, 1.0
    %v216 = vmin.f32 %v212, 1.0
    %v217 = vmin.f32 %v213, 1.0
    %218 = vst [vmem:[#allocation5] sm:$0xff] %v214
    %219 = vst [vmem:[#allocation5 + $0x8] sm:$0xff] %v215
    %220 = vst [vmem:[#allocation5 + $0x10] sm:$0xff] %v216
    %221 = vst [vmem:[#allocation5 + $0x18] sm:$0xff] %v217
    // Predicated region
    $region10: #{tpu_custom_call.1} parent=1 // pred_check
      _
    $region11: #{tpu_custom_call.1} parent=1 // pred_check_branch
      %223 = sbr.rel (0) target = $region13
    $region12: #{tpu_custom_call.1} parent=1 // pred_region
      %s225 = ssub.s32 512, 512
      %226 = vsyncadd [#allocation4], %s225
      %s227 = sshll.u32 [#allocation5], 4
      %s228 = int_to_ptr.vmem [resolvable:$true] %s227
      %233 = dma.vmem_to_hbm [thread:$0]  %s228, 512, %s1, [#allocation4], 256, 256, 16
    $region13: #{tpu_custom_call.1} parent=1 // pred_fallthru
      _
    // Predicated region
    $region14: #{tpu_custom_call.1} parent=1 // pred_check
      _
    $region15: #{tpu_custom_call.1} parent=1 // pred_check_branch
      %235 = sbr.rel (0) target = $region17
    $region16: #{tpu_custom_call.1} parent=1 // pred_region
      %236 = dma.done [#allocation4], 512
    $region17: #{tpu_custom_call.1} parent=1 // pred_fallthru
      _
    %237 = vsyncpa [#allocation3], 1
    %238 = vsyncpa [#allocation4], 1

</llo_original>
